<compile_context>
chip_gen: v7x
topology: tpu7x:2x2x1
jax: 0.10.0
libtpu: 0.0.40
codegen_flags: <defaults>
</compile_context>

<pallas_src>
from functools import partial

import jax
import jax.numpy as jnp
from jax.experimental import pallas as pl
from jax.experimental.pallas import tpu as pltpu

LRELU_SLOPE = 0.2
LN_EPS = 1e-5
LANE = 128


def _round_up(n, m):
    return ((n + m - 1) // m) * m


def _lrelu(v):
    return jnp.where(v >= 0, v, LRELU_SLOPE * v)


def _layernorm(v, gamma, beta, n_real):
    # Padded lanes of `v` are exactly zero (zero-padded weights/biases), so
    # full-lane sums equal sums over the real `n_real` features.
    inv_n = 1.0 / float(n_real)
    mu = jnp.sum(v, axis=-1, keepdims=True) * inv_n
    ex2 = jnp.sum(v * v, axis=-1, keepdims=True) * inv_n
    var = jnp.maximum(ex2 - mu * mu, 0.0)       # guard catastrophic cancellation
    return (v - mu) * jax.lax.rsqrt(var + LN_EPS) * gamma + beta


def resblock_kernel(x_ref, wcat_ref, w2t_ref, p_ref, o_ref, *,
                    n_neurons, fout, n_p, matmul_dtype):
    x = x_ref[...].astype(matmul_dtype)         # (tb, Fin), cast in VMEM

    # Packed 1-row parameter slab, lane layout [n_p lanes | fout_p lanes]:
    #   row 0: [b1  | b3 ]    row 1: [g1  | b2 ]
    #   row 2: [be1 | g2 ]    row 3: [ 0  | be2]
    bcat = p_ref[0:1, :]
    g1, be1 = p_ref[1:2, :n_p], p_ref[2:3, :n_p]
    b2, g2, be2 = p_ref[1:2, n_p:], p_ref[2:3, n_p:], p_ref[3:4, n_p:]

    # Fused fc1 + fc3: one MXU matmul over the concatenated weight slab.
    y = jnp.dot(x, wcat_ref[...], preferred_element_type=jnp.float32) + bcat
    h = y[:, :n_p]                  # fc1 pre-norm  (lane-aligned slice)
    xin = _lrelu(y[:, n_p:])        # skip path: LeakyReLU(fc3(x))

    # main path: LayerNorm(n_neurons) -> LeakyReLU -> fc2 -> LayerNorm(Fout)
    h = _lrelu(_layernorm(h, g1, be1, n_neurons))
    h2 = jnp.dot(h.astype(matmul_dtype), w2t_ref[...],
                 preferred_element_type=jnp.float32) + b2
    h2 = _layernorm(h2, g2, be2, fout)

    # residual add + final LeakyReLU (final_nl=True); lane-dense store.
    # TODO(synk): optional bf16 temporaries / bf16 output for v6e+/v5e consumers.
    o_ref[...] = _lrelu(xin + h2)


def pack_resblock_params(params, matmul_dtype=jnp.bfloat16):
    """One-time prep (hoisted out of the forward): pad/concat/cast the weights."""
    w1t, b1, g1, be1, w2t, b2, g2, be2, w3t, b3 = params
    Fin, n_neurons = w1t.shape
    Fout = w2t.shape[1]
    n_p, fout_p = _round_up(n_neurons, LANE), _round_up(Fout, LANE)

    def padc(a, cols):  # zero-pad last dim to `cols`
        return jnp.pad(a, ((0, 0), (0, cols - a.shape[1])))

    # [W1^T | W3^T] over the true Fin rows (kernel block == full array dims).
    wcat = jnp.concatenate([padc(w1t, n_p), padc(w3t, fout_p)],
                           axis=1).astype(matmul_dtype)            # (Fin, n_p+fout_p)
    w2t_p = jnp.pad(w2t, ((0, n_p - n_neurons),
                          (0, fout_p - Fout))).astype(matmul_dtype)  # (n_p, fout_p)

    def row(left, right):
        return jnp.concatenate([padc(left, n_p), padc(right, fout_p)], axis=1)

    zl = jnp.zeros((1, n_neurons), jnp.float32)
    pslab = jnp.concatenate([
        row(b1, b3), row(g1, b2), row(be1, g2), row(zl, be2),
        jnp.zeros((4, n_p + fout_p), jnp.float32),
    ], axis=0)                                                     # (8, n_p+fout_p)

    meta = dict(Fin=Fin, n_neurons=n_neurons, Fout=Fout,
                n_p=n_p, fout_p=fout_p, matmul_dtype=matmul_dtype)
    return (wcat, w2t_p, pslab), meta


def _vmem_budget_bytes():
    # 128 MiB physical on v5e/v6e, 64 MiB per TensorCore on v7x.
    try:
        cap = int(pltpu.get_tpu_info().vmem_capacity_bytes)
    except Exception:
        cap = 64 * 1024 * 1024
    return min(int(cap * 0.8), 100 * 1024 * 1024)


def _estimate_vmem(tb, fin, n_p, fout_p, mm_bytes):
    w = n_p + fout_p
    return ((fin * w + n_p * fout_p) * mm_bytes   # weights, single-buffered
            + 8 * w * 4                           # packed param slab (f32)
            + 2 * tb * fin * 4                    # x tile (f32), double-buffered
            + 2 * tb * fout_p * 4                 # out tile (f32), double-buffered
            + 3 * tb * w * 4)                     # f32 temporaries headroom


def resblock_pallas(x, packed, meta, *, tb=None):
    wcat, w2t_p, pslab = packed
    Fin, n_neurons, Fout = meta["Fin"], meta["n_neurons"], meta["Fout"]
    n_p, fout_p = meta["n_p"], meta["fout_p"]
    matmul_dtype = meta["matmul_dtype"]
    B = x.shape[0]
    assert x.shape[1] == Fin
    w = n_p + fout_p
    mm_bytes = jnp.dtype(matmul_dtype).itemsize
    budget = _vmem_budget_bytes()

    if tb is None:
        if B >= 32:
            # >=2 grid steps so both v7x TensorCores get work; keep 8-row align.
            tb = min(512, _round_up(pl.cdiv(B, 2), 16))
        else:
            tb = B
        # Shrink to fit the per-core VMEM budget but keep the MXU fed (>=256).
        while tb > 256 and _estimate_vmem(tb, Fin, n_p, fout_p, mm_bytes) > budget:
            tb = max(256, _round_up(tb // 2, 8))

    grid = (pl.cdiv(B, tb),)
    est = _estimate_vmem(tb, Fin, n_p, fout_p, mm_bytes)
    vmem_limit = int(min(max(2 * est, 16 * 1024 * 1024), budget))

    kernel = partial(resblock_kernel, n_neurons=n_neurons, fout=Fout,
                     n_p=n_p, matmul_dtype=matmul_dtype)

    def build(single_buffer_params):
        pm = pl.Buffered(1) if single_buffer_params else None

        def const(shape):   # whole-array parameter block, constant grid index
            return pl.BlockSpec(shape, lambda i: (0, 0), pipeline_mode=pm)

        return pl.pallas_call(
            kernel,
            out_shape=jax.ShapeDtypeStruct((B, fout_p), jnp.float32),
            grid_spec=pltpu.PrefetchScalarGridSpec(
                num_scalar_prefetch=0,
                grid=grid,
                in_specs=[
                    pl.BlockSpec((tb, Fin), lambda i: (i, 0)),   # x tile (f32)
                    const((Fin, w)),                             # [W1^T | W3^T]
                    const((n_p, fout_p)),                        # W2^T
                    const((8, w)),                               # packed vectors
                ],
                out_specs=pl.BlockSpec((tb, fout_p), lambda i: (i, 0)),
            ),
            compiler_params=pltpu.CompilerParams(
                dimension_semantics=("parallel",),
                vmem_limit_bytes=vmem_limit),
        )

    try:
        out_p = jax.block_until_ready(build(True)(x, wcat, w2t_p, pslab))
    except Exception:
        # Fallback if this JAX/Mosaic build rejects single-buffered params.
        out_p = jax.block_until_ready(build(False)(x, wcat, w2t_p, pslab))

    # Drop the lane padding (the kernel wrote a lane-dense 128-wide slab).
    return out_p[:, :Fout]


def init_params(key, Fin, Fout, n_neurons):
    ks = jax.random.split(key, 6)

    def linear(k, fan_in, fan_out):
        kw, kb = jax.random.split(k)
        bound = 1.0 / jnp.sqrt(fan_in)
        wt = jax.random.uniform(kw, (fan_out, fan_in), jnp.float32, -bound, bound)
        b = jax.random.uniform(kb, (1, fan_out), jnp.float32, -bound, bound)
        return wt, b

    w1, b1 = linear(ks[0], Fin, n_neurons)
    w2, b2 = linear(ks[1], n_neurons, Fout)
    w3, b3 = linear(ks[2], Fin, Fout)
    # LayerNorm affine params (PyTorch default gamma=1, beta=0; perturb so the
    # affine part is actually exercised).
    g1 = 1.0 + 0.1 * jax.random.normal(ks[3], (1, n_neurons), jnp.float32)
    be1 = 0.1 * jax.random.normal(ks[4], (1, n_neurons), jnp.float32)
    g2 = 1.0 + 0.1 * jax.random.normal(ks[5], (1, Fout), jnp.float32)
    be2 = jnp.zeros((1, Fout), jnp.float32)
    # Pass transposed weights so the kernel computes x @ W^T as plain x @ Wt.
    return (w1.T, b1, g1, be1, w2.T, b2, g2, be2, w3.T, b3)


def resblock_ref(x, params, matmul_dtype=jnp.bfloat16):
    # Pure-JAX reference with the same matmul operand precision as the kernel.
    w1t, b1, g1, be1, w2t, b2, g2, be2, w3t, b3 = params

    def ln(v, g, b):
        mu = jnp.mean(v, -1, keepdims=True)
        var = jnp.mean((v - mu) ** 2, -1, keepdims=True)
        return (v - mu) / jnp.sqrt(var + LN_EPS) * g + b

    def lr(v):
        return jnp.where(v >= 0, v, LRELU_SLOPE * v)

    def mm(a, wt):
        return jnp.dot(a.astype(matmul_dtype), wt.astype(matmul_dtype),
                       preferred_element_type=jnp.float32)

    xin = lr(mm(x, w3t) + b3)
    h = lr(ln(mm(x, w1t) + b1, g1, be1))
    h = ln(mm(h, w2t) + b2, g2, be2)
    return lr(xin + h)


if __name__ == "__main__":
    B, Fin, Fout, n_neurons = 16, 16, 32, 64

    key = jax.random.PRNGKey(0)
    kx, kp = jax.random.split(key)
    x = jax.random.normal(kx, (B, Fin), jnp.float32)
    params = init_params(kp, Fin, Fout, n_neurons)

    # One-time weight prep (hoisted out of the per-call path).
    packed, meta = pack_resblock_params(params)

    out = resblock_pallas(x, packed, meta)
    out = jax.block_until_ready(out)

    ref = resblock_ref(x, params)
    assert out.shape == (B, Fout)
    assert jnp.allclose(out, ref, atol=2e-3, rtol=2e-3), "mismatch vs reference"

    print("KERNEL_OK")
</pallas_src>

<mosaic_0001>
module attributes {stable_mosaic.version = 11 : i64} {
  func.func @resblock_kernel(%arg0: i32, %arg1: memref<16x16xf32, #tpu.memory_space<vmem>>, %arg2: memref<16x256xbf16, #tpu.memory_space<vmem>>, %arg3: memref<128x128xbf16, #tpu.memory_space<vmem>>, %arg4: memref<8x256xf32, #tpu.memory_space<vmem>>, %arg5: memref<16x128xf32, #tpu.memory_space<vmem>>) attributes {dimension_semantics = [#tpu.dimension_semantics<parallel>], iteration_bounds = array<i64: 1>, scalar_prefetch = 0 : i64, scratch_operands = 0 : i64, tpu.core_type = #tpu.core_type<tc>, window_params = [{transform_indices = @transform_0, window_bounds = array<i64: 16, 16>}, {pipeline_mode = #tpu.pipeline_mode<synchronous>, transform_indices = @transform_1, window_bounds = array<i64: 16, 256>}, {pipeline_mode = #tpu.pipeline_mode<synchronous>, transform_indices = @transform_2, window_bounds = array<i64: 128, 128>}, {pipeline_mode = #tpu.pipeline_mode<synchronous>, transform_indices = @transform_3, window_bounds = array<i64: 8, 256>}, {transform_indices = @transform_4, window_bounds = array<i64: 16, 128>}]} {
    %c0 = arith.constant 0 : index
    %c0_0 = arith.constant 0 : index
    %0 = vector.load %arg1[%c0, %c0_0] : memref<16x16xf32, #tpu.memory_space<vmem>>, vector<16x16xf32>
    %1 = arith.truncf %0 : vector<16x16xf32> to vector<16x16xbf16>
    %c0_1 = arith.constant 0 : index
    %c0_2 = arith.constant 0 : index
    %2 = vector.load %arg4[%c0_1, %c0_2] : memref<8x256xf32, #tpu.memory_space<vmem>>, vector<1x256xf32>
    %c1 = arith.constant 1 : index
    %c0_3 = arith.constant 0 : index
    %3 = vector.load %arg4[%c1, %c0_3] : memref<8x256xf32, #tpu.memory_space<vmem>>, vector<1x128xf32>
    %c2 = arith.constant 2 : index
    %c0_4 = arith.constant 0 : index
    %4 = vector.load %arg4[%c2, %c0_4] : memref<8x256xf32, #tpu.memory_space<vmem>>, vector<1x128xf32>
    %c1_5 = arith.constant 1 : index
    %c128 = arith.constant 128 : index
    %5 = vector.load %arg4[%c1_5, %c128] : memref<8x256xf32, #tpu.memory_space<vmem>>, vector<1x128xf32>
    %c2_6 = arith.constant 2 : index
    %c128_7 = arith.constant 128 : index
    %6 = vector.load %arg4[%c2_6, %c128_7] : memref<8x256xf32, #tpu.memory_space<vmem>>, vector<1x128xf32>
    %c3 = arith.constant 3 : index
    %c128_8 = arith.constant 128 : index
    %7 = vector.load %arg4[%c3, %c128_8] : memref<8x256xf32, #tpu.memory_space<vmem>>, vector<1x128xf32>
    %c0_9 = arith.constant 0 : index
    %c0_10 = arith.constant 0 : index
    %8 = vector.load %arg2[%c0_9, %c0_10] : memref<16x256xbf16, #tpu.memory_space<vmem>>, vector<16x256xbf16>
    %cst = arith.constant dense<0.000000e+00> : vector<16x256xf32>
    %9 = tpu.matmul %1, %8, %cst {dimension_numbers = #tpu.dot_dimension_numbers<[1], [0], [0], [1], [0, 0, 1, 1], [], []>} : vector<16x16xbf16>, vector<16x256xbf16>, vector<16x256xf32> -> vector<16x256xf32>
    %10 = vector.broadcast %2 : vector<1x256xf32> to vector<16x256xf32>
    %11 = arith.addf %9, %10 : vector<16x256xf32>
    %12 = vector.extract_strided_slice %11 {offsets = [0, 0], sizes = [16, 128], strides = [1, 1]} : vector<16x256xf32> to vector<16x128xf32>
    %13 = vector.extract_strided_slice %11 {offsets = [0, 128], sizes = [16, 128], strides = [1, 1]} : vector<16x256xf32> to vector<16x128xf32>
    %cst_11 = arith.constant 0.000000e+00 : f32
    %14 = vector.broadcast %cst_11 : f32 to vector<16x128xf32>
    %15 = arith.cmpf oge, %13, %14 : vector<16x128xf32>
    %cst_12 = arith.constant 2.000000e-01 : f32
    %16 = vector.broadcast %cst_12 : f32 to vector<16x128xf32>
    %17 = arith.mulf %16, %13 : vector<16x128xf32>
    %18 = arith.select %15, %13, %17 : vector<16x128xi1>, vector<16x128xf32>
    %cst_13 = arith.constant dense<0.000000e+00> : vector<16xf32>
    %19 = vector.multi_reduction <add>, %12, %cst_13 [1] : vector<16x128xf32> to vector<16xf32>
    %20 = vector.shape_cast %19 : vector<16xf32> to vector<16x1xf32>
    %cst_14 = arith.constant 1.562500e-02 : f32
    %21 = vector.broadcast %cst_14 : f32 to vector<16x1xf32>
    %22 = arith.mulf %20, %21 : vector<16x1xf32>
    %23 = arith.mulf %12, %12 : vector<16x128xf32>
    %cst_15 = arith.constant dense<0.000000e+00> : vector<16xf32>
    %24 = vector.multi_reduction <add>, %23, %cst_15 [1] : vector<16x128xf32> to vector<16xf32>
    %25 = vector.shape_cast %24 : vector<16xf32> to vector<16x1xf32>
    %cst_16 = arith.constant 1.562500e-02 : f32
    %26 = vector.broadcast %cst_16 : f32 to vector<16x1xf32>
    %27 = arith.mulf %25, %26 : vector<16x1xf32>
    %28 = arith.mulf %22, %22 : vector<16x1xf32>
    %29 = arith.subf %27, %28 : vector<16x1xf32>
    %cst_17 = arith.constant 0.000000e+00 : f32
    %30 = vector.broadcast %cst_17 : f32 to vector<16x1xf32>
    %31 = arith.maximumf %29, %30 : vector<16x1xf32>
    %32 = vector.broadcast %22 : vector<16x1xf32> to vector<16x128xf32>
    %33 = arith.subf %12, %32 : vector<16x128xf32>
    %cst_18 = arith.constant 9.99999974E-6 : f32
    %34 = vector.broadcast %cst_18 : f32 to vector<16x1xf32>
    %35 = arith.addf %31, %34 : vector<16x1xf32>
    %36 = math.rsqrt %35 : vector<16x1xf32>
    %37 = vector.broadcast %36 : vector<16x1xf32> to vector<16x128xf32>
    %38 = arith.mulf %33, %37 : vector<16x128xf32>
    %39 = vector.broadcast %3 : vector<1x128xf32> to vector<16x128xf32>
    %40 = arith.mulf %38, %39 : vector<16x128xf32>
    %41 = vector.broadcast %4 : vector<1x128xf32> to vector<16x128xf32>
    %42 = arith.addf %40, %41 : vector<16x128xf32>
    %cst_19 = arith.constant 0.000000e+00 : f32
    %43 = vector.broadcast %cst_19 : f32 to vector<16x128xf32>
    %44 = arith.cmpf oge, %42, %43 : vector<16x128xf32>
    %cst_20 = arith.constant 2.000000e-01 : f32
    %45 = vector.broadcast %cst_20 : f32 to vector<16x128xf32>
    %46 = arith.mulf %45, %42 : vector<16x128xf32>
    %47 = arith.select %44, %42, %46 : vector<16x128xi1>, vector<16x128xf32>
    %48 = arith.truncf %47 : vector<16x128xf32> to vector<16x128xbf16>
    %c0_21 = arith.constant 0 : index
    %c0_22 = arith.constant 0 : index
    %49 = vector.load %arg3[%c0_21, %c0_22] : memref<128x128xbf16, #tpu.memory_space<vmem>>, vector<128x128xbf16>
    %cst_23 = arith.constant dense<0.000000e+00> : vector<16x128xf32>
    %50 = tpu.matmul %48, %49, %cst_23 {dimension_numbers = #tpu.dot_dimension_numbers<[1], [0], [0], [1], [0, 0, 1, 1], [], []>} : vector<16x128xbf16>, vector<128x128xbf16>, vector<16x128xf32> -> vector<16x128xf32>
    %51 = vector.broadcast %5 : vector<1x128xf32> to vector<16x128xf32>
    %52 = arith.addf %50, %51 : vector<16x128xf32>
    %cst_24 = arith.constant dense<0.000000e+00> : vector<16xf32>
    %53 = vector.multi_reduction <add>, %52, %cst_24 [1] : vector<16x128xf32> to vector<16xf32>
    %54 = vector.shape_cast %53 : vector<16xf32> to vector<16x1xf32>
    %cst_25 = arith.constant 3.125000e-02 : f32
    %55 = vector.broadcast %cst_25 : f32 to vector<16x1xf32>
    %56 = arith.mulf %54, %55 : vector<16x1xf32>
    %57 = arith.mulf %52, %52 : vector<16x128xf32>
    %cst_26 = arith.constant dense<0.000000e+00> : vector<16xf32>
    %58 = vector.multi_reduction <add>, %57, %cst_26 [1] : vector<16x128xf32> to vector<16xf32>
    %59 = vector.shape_cast %58 : vector<16xf32> to vector<16x1xf32>
    %cst_27 = arith.constant 3.125000e-02 : f32
    %60 = vector.broadcast %cst_27 : f32 to vector<16x1xf32>
    %61 = arith.mulf %59, %60 : vector<16x1xf32>
    %62 = arith.mulf %56, %56 : vector<16x1xf32>
    %63 = arith.subf %61, %62 : vector<16x1xf32>
    %cst_28 = arith.constant 0.000000e+00 : f32
    %64 = vector.broadcast %cst_28 : f32 to vector<16x1xf32>
    %65 = arith.maximumf %63, %64 : vector<16x1xf32>
    %66 = vector.broadcast %56 : vector<16x1xf32> to vector<16x128xf32>
    %67 = arith.subf %52, %66 : vector<16x128xf32>
    %cst_29 = arith.constant 9.99999974E-6 : f32
    %68 = vector.broadcast %cst_29 : f32 to vector<16x1xf32>
    %69 = arith.addf %65, %68 : vector<16x1xf32>
    %70 = math.rsqrt %69 : vector<16x1xf32>
    %71 = vector.broadcast %70 : vector<16x1xf32> to vector<16x128xf32>
    %72 = arith.mulf %67, %71 : vector<16x128xf32>
    %73 = vector.broadcast %6 : vector<1x128xf32> to vector<16x128xf32>
    %74 = arith.mulf %72, %73 : vector<16x128xf32>
    %75 = vector.broadcast %7 : vector<1x128xf32> to vector<16x128xf32>
    %76 = arith.addf %74, %75 : vector<16x128xf32>
    %77 = arith.addf %18, %76 : vector<16x128xf32>
    %cst_30 = arith.constant 0.000000e+00 : f32
    %78 = vector.broadcast %cst_30 : f32 to vector<16x128xf32>
    %79 = arith.cmpf oge, %77, %78 : vector<16x128xf32>
    %cst_31 = arith.constant 2.000000e-01 : f32
    %80 = vector.broadcast %cst_31 : f32 to vector<16x128xf32>
    %81 = arith.mulf %80, %77 : vector<16x128xf32>
    %82 = arith.select %79, %77, %81 : vector<16x128xi1>, vector<16x128xf32>
    %c0_32 = arith.constant 0 : index
    %c0_33 = arith.constant 0 : index
    %83 = vector.load %arg5[%c0_32, %c0_33] : memref<16x128xf32, #tpu.memory_space<vmem>>, vector<16x128xf32>
    tpu.vector_store %arg5[%c0_32, %c0_33], %82 {strides = array<i32>} : memref<16x128xf32, #tpu.memory_space<vmem>>, vector<16x128xf32>,
    return
  }
  func.func @transform_0(%arg0: i32) -> (i32, i32) {
    %c0_i32 = arith.constant 0 : i32
    %c0_i32_0 = arith.constant 0 : i32
    return %arg0, %c0_i32 : i32, i32
  }
  func.func @transform_1(%arg0: i32) -> (i32, i32) {
    %c0_i32 = arith.constant 0 : i32
    %c0_i32_0 = arith.constant 0 : i32
    %c0_i32_1 = arith.constant 0 : i32
    return %c0_i32, %c0_i32_0 : i32, i32
  }
  func.func @transform_2(%arg0: i32) -> (i32, i32) {
    %c0_i32 = arith.constant 0 : i32
    %c0_i32_0 = arith.constant 0 : i32
    %c0_i32_1 = arith.constant 0 : i32
    return %c0_i32, %c0_i32_0 : i32, i32
  }
  func.func @transform_3(%arg0: i32) -> (i32, i32) {
    %c0_i32 = arith.constant 0 : i32
    %c0_i32_0 = arith.constant 0 : i32
    %c0_i32_1 = arith.constant 0 : i32
    return %c0_i32, %c0_i32_0 : i32, i32
  }
  func.func @transform_4(%arg0: i32) -> (i32, i32) {
    %c0_i32 = arith.constant 0 : i32
    %c0_i32_0 = arith.constant 0 : i32
    return %arg0, %c0_i32 : i32, i32
  }
}

module attributes {stable_mosaic.version = 11 : i64} {
  func.func @resblock_kernel(%arg0: i32, %arg1: memref<16x16xf32, #tpu.memory_space<vmem>>, %arg2: memref<16x256xbf16, #tpu.memory_space<vmem>>, %arg3: memref<128x128xbf16, #tpu.memory_space<vmem>>, %arg4: memref<8x256xf32, #tpu.memory_space<vmem>>, %arg5: memref<16x128xf32, #tpu.memory_space<vmem>>) attributes {dimension_semantics = [#tpu.dimension_semantics<parallel>], iteration_bounds = array<i64: 1>, scalar_prefetch = 0 : i64, scratch_operands = 0 : i64, tpu.core_type = #tpu.core_type<tc>, window_params = [{transform_indices = @transform_0, window_bounds = array<i64: 16, 16>}, {pipeline_mode = #tpu.pipeline_mode<synchronous>, transform_indices = @transform_1, window_bounds = array<i64: 16, 256>}, {pipeline_mode = #tpu.pipeline_mode<synchronous>, transform_indices = @transform_2, window_bounds = array<i64: 128, 128>}, {pipeline_mode = #tpu.pipeline_mode<synchronous>, transform_indices = @transform_3, window_bounds = array<i64: 8, 256>}, {transform_indices = @transform_4, window_bounds = array<i64: 16, 128>}]} {
    %c0 = arith.constant 0 : index
    %c0_0 = arith.constant 0 : index
    %0 = vector.load %arg1[%c0, %c0_0] : memref<16x16xf32, #tpu.memory_space<vmem>>, vector<16x16xf32>
    %1 = arith.truncf %0 : vector<16x16xf32> to vector<16x16xbf16>
    %c0_1 = arith.constant 0 : index
    %c0_2 = arith.constant 0 : index
    %2 = vector.load %arg4[%c0_1, %c0_2] : memref<8x256xf32, #tpu.memory_space<vmem>>, vector<1x256xf32>
    %c1 = arith.constant 1 : index
    %c0_3 = arith.constant 0 : index
    %3 = vector.load %arg4[%c1, %c0_3] : memref<8x256xf32, #tpu.memory_space<vmem>>, vector<1x128xf32>
    %c2 = arith.constant 2 : index
    %c0_4 = arith.constant 0 : index
    %4 = vector.load %arg4[%c2, %c0_4] : memref<8x256xf32, #tpu.memory_space<vmem>>, vector<1x128xf32>
    %c1_5 = arith.constant 1 : index
    %c128 = arith.constant 128 : index
    %5 = vector.load %arg4[%c1_5, %c128] : memref<8x256xf32, #tpu.memory_space<vmem>>, vector<1x128xf32>
    %c2_6 = arith.constant 2 : index
    %c128_7 = arith.constant 128 : index
    %6 = vector.load %arg4[%c2_6, %c128_7] : memref<8x256xf32, #tpu.memory_space<vmem>>, vector<1x128xf32>
    %c3 = arith.constant 3 : index
    %c128_8 = arith.constant 128 : index
    %7 = vector.load %arg4[%c3, %c128_8] : memref<8x256xf32, #tpu.memory_space<vmem>>, vector<1x128xf32>
    %c0_9 = arith.constant 0 : index
    %c0_10 = arith.constant 0 : index
    %8 = vector.load %arg2[%c0_9, %c0_10] : memref<16x256xbf16, #tpu.memory_space<vmem>>, vector<16x256xbf16>
    %cst = arith.constant dense<0.000000e+00> : vector<16x256xf32>
    %9 = tpu.matmul %1, %8, %cst {dimension_numbers = #tpu.dot_dimension_numbers<[1], [0], [0], [1], [0, 0, 1, 1], [], []>} : vector<16x16xbf16>, vector<16x256xbf16>, vector<16x256xf32> -> vector<16x256xf32>
    %10 = vector.broadcast %2 : vector<1x256xf32> to vector<16x256xf32>
    %11 = arith.addf %9, %10 : vector<16x256xf32>
    %12 = vector.extract_strided_slice %11 {offsets = [0, 0], sizes = [16, 128], strides = [1, 1]} : vector<16x256xf32> to vector<16x128xf32>
    %13 = vector.extract_strided_slice %11 {offsets = [0, 128], sizes = [16, 128], strides = [1, 1]} : vector<16x256xf32> to vector<16x128xf32>
    %cst_11 = arith.constant 0.000000e+00 : f32
    %14 = vector.broadcast %cst_11 : f32 to vector<16x128xf32>
    %15 = arith.cmpf oge, %13, %14 : vector<16x128xf32>
    %cst_12 = arith.constant 2.000000e-01 : f32
    %16 = vector.broadcast %cst_12 : f32 to vector<16x128xf32>
    %17 = arith.mulf %16, %13 : vector<16x128xf32>
    %18 = arith.select %15, %13, %17 : vector<16x128xi1>, vector<16x128xf32>
    %cst_13 = arith.constant dense<0.000000e+00> : vector<16xf32>
    %19 = vector.multi_reduction <add>, %12, %cst_13 [1] : vector<16x128xf32> to vector<16xf32>
    %20 = vector.shape_cast %19 : vector<16xf32> to vector<16x1xf32>
    %cst_14 = arith.constant 1.562500e-02 : f32
    %21 = vector.broadcast %cst_14 : f32 to vector<16x1xf32>
    %22 = arith.mulf %20, %21 : vector<16x1xf32>
    %23 = arith.mulf %12, %12 : vector<16x128xf32>
    %cst_15 = arith.constant dense<0.000000e+00> : vector<16xf32>
    %24 = vector.multi_reduction <add>, %23, %cst_15 [1] : vector<16x128xf32> to vector<16xf32>
    %25 = vector.shape_cast %24 : vector<16xf32> to vector<16x1xf32>
    %cst_16 = arith.constant 1.562500e-02 : f32
    %26 = vector.broadcast %cst_16 : f32 to vector<16x1xf32>
    %27 = arith.mulf %25, %26 : vector<16x1xf32>
    %28 = arith.mulf %22, %22 : vector<16x1xf32>
    %29 = arith.subf %27, %28 : vector<16x1xf32>
    %cst_17 = arith.constant 0.000000e+00 : f32
    %30 = vector.broadcast %cst_17 : f32 to vector<16x1xf32>
    %31 = arith.maximumf %29, %30 : vector<16x1xf32>
    %32 = vector.broadcast %22 : vector<16x1xf32> to vector<16x128xf32>
    %33 = arith.subf %12, %32 : vector<16x128xf32>
    %cst_18 = arith.constant 9.99999974E-6 : f32
    %34 = vector.broadcast %cst_18 : f32 to vector<16x1xf32>
    %35 = arith.addf %31, %34 : vector<16x1xf32>
    %36 = math.rsqrt %35 : vector<16x1xf32>
    %37 = vector.broadcast %36 : vector<16x1xf32> to vector<16x128xf32>
    %38 = arith.mulf %33, %37 : vector<16x128xf32>
    %39 = vector.broadcast %3 : vector<1x128xf32> to vector<16x128xf32>
    %40 = arith.mulf %38, %39 : vector<16x128xf32>
    %41 = vector.broadcast %4 : vector<1x128xf32> to vector<16x128xf32>
    %42 = arith.addf %40, %41 : vector<16x128xf32>
    %cst_19 = arith.constant 0.000000e+00 : f32
    %43 = vector.broadcast %cst_19 : f32 to vector<16x128xf32>
    %44 = arith.cmpf oge, %42, %43 : vector<16x128xf32>
    %cst_20 = arith.constant 2.000000e-01 : f32
    %45 = vector.broadcast %cst_20 : f32 to vector<16x128xf32>
    %46 = arith.mulf %45, %42 : vector<16x128xf32>
    %47 = arith.select %44, %42, %46 : vector<16x128xi1>, vector<16x128xf32>
    %48 = arith.truncf %47 : vector<16x128xf32> to vector<16x128xbf16>
    %c0_21 = arith.constant 0 : index
    %c0_22 = arith.constant 0 : index
    %49 = vector.load %arg3[%c0_21, %c0_22] : memref<128x128xbf16, #tpu.memory_space<vmem>>, vector<128x128xbf16>
    %cst_23 = arith.constant dense<0.000000e+00> : vector<16x128xf32>
    %50 = tpu.matmul %48, %49, %cst_23 {dimension_numbers = #tpu.dot_dimension_numbers<[1], [0], [0], [1], [0, 0, 1, 1], [], []>} : vector<16x128xbf16>, vector<128x128xbf16>, vector<16x128xf32> -> vector<16x128xf32>
    %51 = vector.broadcast %5 : vector<1x128xf32> to vector<16x128xf32>
    %52 = arith.addf %50, %51 : vector<16x128xf32>
    %cst_24 = arith.constant dense<0.000000e+00> : vector<16xf32>
    %53 = vector.multi_reduction <add>, %52, %cst_24 [1] : vector<16x128xf32> to vector<16xf32>
    %54 = vector.shape_cast %53 : vector<16xf32> to vector<16x1xf32>
    %cst_25 = arith.constant 3.125000e-02 : f32
    %55 = vector.broadcast %cst_25 : f32 to vector<16x1xf32>
    %56 = arith.mulf %54, %55 : vector<16x1xf32>
    %57 = arith.mulf %52, %52 : vector<16x128xf32>
    %cst_26 = arith.constant dense<0.000000e+00> : vector<16xf32>
    %58 = vector.multi_reduction <add>, %57, %cst_26 [1] : vector<16x128xf32> to vector<16xf32>
    %59 = vector.shape_cast %58 : vector<16xf32> to vector<16x1xf32>
    %cst_27 = arith.constant 3.125000e-02 : f32
    %60 = vector.broadcast %cst_27 : f32 to vector<16x1xf32>
    %61 = arith.mulf %59, %60 : vector<16x1xf32>
    %62 = arith.mulf %56, %56 : vector<16x1xf32>
    %63 = arith.subf %61, %62 : vector<16x1xf32>
    %cst_28 = arith.constant 0.000000e+00 : f32
    %64 = vector.broadcast %cst_28 : f32 to vector<16x1xf32>
    %65 = arith.maximumf %63, %64 : vector<16x1xf32>
    %66 = vector.broadcast %56 : vector<16x1xf32> to vector<16x128xf32>
    %67 = arith.subf %52, %66 : vector<16x128xf32>
    %cst_29 = arith.constant 9.99999974E-6 : f32
    %68 = vector.broadcast %cst_29 : f32 to vector<16x1xf32>
    %69 = arith.addf %65, %68 : vector<16x1xf32>
    %70 = math.rsqrt %69 : vector<16x1xf32>
    %71 = vector.broadcast %70 : vector<16x1xf32> to vector<16x128xf32>
    %72 = arith.mulf %67, %71 : vector<16x128xf32>
    %73 = vector.broadcast %6 : vector<1x128xf32> to vector<16x128xf32>
    %74 = arith.mulf %72, %73 : vector<16x128xf32>
    %75 = vector.broadcast %7 : vector<1x128xf32> to vector<16x128xf32>
    %76 = arith.addf %74, %75 : vector<16x128xf32>
    %77 = arith.addf %18, %76 : vector<16x128xf32>
    %cst_30 = arith.constant 0.000000e+00 : f32
    %78 = vector.broadcast %cst_30 : f32 to vector<16x128xf32>
    %79 = arith.cmpf oge, %77, %78 : vector<16x128xf32>
    %cst_31 = arith.constant 2.000000e-01 : f32
    %80 = vector.broadcast %cst_31 : f32 to vector<16x128xf32>
    %81 = arith.mulf %80, %77 : vector<16x128xf32>
    %82 = arith.select %79, %77, %81 : vector<16x128xi1>, vector<16x128xf32>
    %c0_32 = arith.constant 0 : index
    %c0_33 = arith.constant 0 : index
    %83 = vector.load %arg5[%c0_32, %c0_33] : memref<16x128xf32, #tpu.memory_space<vmem>>, vector<16x128xf32>
    tpu.vector_store %arg5[%c0_32, %c0_33], %82 {strides = array<i32>} : memref<16x128xf32, #tpu.memory_space<vmem>>, vector<16x128xf32>,
    return
  }
  func.func @transform_0(%arg0: i32) -> (i32, i32) {
    %c0_i32 = arith.constant 0 : i32
    %c0_i32_0 = arith.constant 0 : i32
    return %arg0, %c0_i32 : i32, i32
  }
  func.func @transform_1(%arg0: i32) -> (i32, i32) {
    %c0_i32 = arith.constant 0 : i32
    %c0_i32_0 = arith.constant 0 : i32
    %c0_i32_1 = arith.constant 0 : i32
    return %c0_i32, %c0_i32_0 : i32, i32
  }
  func.func @transform_2(%arg0: i32) -> (i32, i32) {
    %c0_i32 = arith.constant 0 : i32
    %c0_i32_0 = arith.constant 0 : i32
    %c0_i32_1 = arith.constant 0 : i32
    return %c0_i32, %c0_i32_0 : i32, i32
  }
  func.func @transform_3(%arg0: i32) -> (i32, i32) {
    %c0_i32 = arith.constant 0 : i32
    %c0_i32_0 = arith.constant 0 : i32
    %c0_i32_1 = arith.constant 0 : i32
    return %c0_i32, %c0_i32_0 : i32, i32
  }
  func.func @transform_4(%arg0: i32) -> (i32, i32) {
    %c0_i32 = arith.constant 0 : i32
    %c0_i32_0 = arith.constant 0 : i32
    return %arg0, %c0_i32 : i32, i32
  }
}

</mosaic_0001>

<llo_original>
// kernel: tpu_custom_call.1
$region0: #{tpu_custom_call.1}
  #allocation0 [shape = 'u32[]', space=smem, size = 0x4, offset = 0x4, fixed_abs, tag = 'smem constant byte address 0x4 - core index']
  #allocation1 [shape = 'u32[144,128]{1,0:T(1,128)}', space=vmem, size = 0x12000, scoped, tag = 'internal scratch']
  %s0 = inlined_call_operand.hbm [shape: f32[16,16], index: 0, kind: input, shape index: {}]
  %s1 = inlined_call_operand.hbm [shape: bf16[16,256], index: 1, kind: input, shape index: {}]
  %s2 = inlined_call_operand.hbm [shape: bf16[128,128], index: 2, kind: input, shape index: {}]
  %s3 = inlined_call_operand.hbm [shape: f32[8,256], index: 3, kind: input, shape index: {}]
  %s4 = inlined_call_operand.hbm [shape: f32[16,128], index: 4, kind: output, shape index: {}]
  %s5 = sld [smem:[#allocation0]]
  $region42: #{tpu_custom_call.1} parent=0
    _
  %s7 = ssub.s32 1, %s5
  %s8 = scalar_select 0, %s7, %s5
  $region1: #{tpu_custom_call.1} parent=0
    #allocation2 [shape = 'u8[8192]{0}', space=vmem, size = 0x2000, scoped, tag = 'input window, operand 0, single buffered']
    #allocation3 [shape = 's32[1]{0}', space=sflag, size = 0x4, scoped, tag = 'scoped memory for tpu_custom_call.1']
    #allocation4 [shape = 's32[1]{0}', space=sflag, size = 0x4, scoped, tag = 'scoped memory for tpu_custom_call.1']
    #allocation5 [shape = 'u8[8192]{0}', space=vmem, size = 0x2000, scoped, tag = 'input window, operand 1, single buffered']
    #allocation6 [shape = 's32[1]{0}', space=sflag, size = 0x4, scoped, tag = 'scoped memory for tpu_custom_call.1']
    #allocation7 [shape = 'u8[32768]{0}', space=vmem, size = 0x8000, scoped, tag = 'input window, operand 2, single buffered']
    #allocation8 [shape = 'u8[8192]{0}', space=vmem, size = 0x2000, scoped, tag = 'input window, operand 3, single buffered']
    #allocation9 [shape = 's32[1]{0}', space=sflag, size = 0x4, scoped, tag = 'scoped memory for tpu_custom_call.1']
    #allocation10 [shape = 'u8[8192]{0}', space=vmem, size = 0x2000, scoped, tag = 'output window, operand 0, single buffered']
    %9 = vsyncpa [#allocation3], 0
    %10 = vsyncpa [#allocation6], 0
    %11 = vsyncpa [#allocation9], 0
    %12 = vsyncpa [#allocation4], 0
    // Predicated region
    $region2: #{tpu_custom_call.1} parent=1 // pred_check
      _
    $region3: #{tpu_custom_call.1} parent=1 // pred_check_branch
      %14 = sbr.rel (0) target = $region5
    $region4: #{tpu_custom_call.1} parent=1 // pred_region
      %s16 = ssub.s32 256, 256
      %17 = vsyncadd [#allocation3], %s16
      %s18 = sshll.u32 [#allocation2], 4
      %s19 = int_to_ptr.vmem [resolvable:$true] %s18
      %24 = dma.hbm_to_vmem [thread:$0]  %s0, 256, %s19, [#allocation3], 128, 128, 8
    $region5: #{tpu_custom_call.1} parent=1 // pred_fallthru
      _
    // Predicated region
    $region6: #{tpu_custom_call.1} parent=1 // pred_check
      _
    $region7: #{tpu_custom_call.1} parent=1 // pred_check_branch
      %26 = sbr.rel (0) target = $region9
    $region8: #{tpu_custom_call.1} parent=1 // pred_region
      %s28 = ssub.s32 256, 256
      %29 = vsyncadd [#allocation6], %s28
      %s30 = sshll.u32 [#allocation5], 4
      %s31 = int_to_ptr.vmem [resolvable:$true] %s30
      %36 = dma.hbm_to_vmem [thread:$0]  %s1, 256, %s31, [#allocation6], 128, 128, 8
    $region9: #{tpu_custom_call.1} parent=1 // pred_fallthru
      _
    // Predicated region
    $region10: #{tpu_custom_call.1} parent=1 // pred_check
      _
    $region11: #{tpu_custom_call.1} parent=1 // pred_check_branch
      %38 = sbr.rel (0) target = $region13
    $region12: #{tpu_custom_call.1} parent=1 // pred_region
      %s40 = ssub.s32 1024, 1024
      %41 = vsyncadd [#allocation6], %s40
      %s42 = sshll.u32 [#allocation7], 4
      %s43 = int_to_ptr.vmem [resolvable:$true] %s42
      %48 = dma.hbm_to_vmem [thread:$0]  %s2, 1024, %s43, [#allocation6], 64, 64, 4
    $region13: #{tpu_custom_call.1} parent=1 // pred_fallthru
      _
    // Predicated region
    $region14: #{tpu_custom_call.1} parent=1 // pred_check
      _
    $region15: #{tpu_custom_call.1} parent=1 // pred_check_branch
      %50 = sbr.rel (0) target = $region17
    $region16: #{tpu_custom_call.1} parent=1 // pred_region
      %s52 = ssub.s32 256, 256
      %53 = vsyncadd [#allocation9], %s52
      %s55 = sshll.u32 [#allocation8], 4
      %s56 = int_to_ptr.vmem [resolvable:$true] %s55
      %58 = dma.hbm_to_vmem [thread:$0]  %s3, 256, %s56, [#allocation9]
    $region17: #{tpu_custom_call.1} parent=1 // pred_fallthru
      _
    // Predicated region
    $region18: #{tpu_custom_call.1} parent=1 // pred_check
      _
    $region19: #{tpu_custom_call.1} parent=1 // pred_check_branch
      %60 = sbr.rel (0) target = $region21
    $region20: #{tpu_custom_call.1} parent=1 // pred_region
      %61 = dma.done [#allocation3], 256
    $region21: #{tpu_custom_call.1} parent=1 // pred_fallthru
      _
    // Predicated region
    $region22: #{tpu_custom_call.1} parent=1 // pred_check
      _
    $region23: #{tpu_custom_call.1} parent=1 // pred_check_branch
      %63 = sbr.rel (0) target = $region25
    $region24: #{tpu_custom_call.1} parent=1 // pred_region
      %64 = dma.done [#allocation6], 256
    $region25: #{tpu_custom_call.1} parent=1 // pred_fallthru
      _
    // Predicated region
    $region26: #{tpu_custom_call.1} parent=1 // pred_check
      _
    $region27: #{tpu_custom_call.1} parent=1 // pred_check_branch
      %66 = sbr.rel (0) target = $region29
    $region28: #{tpu_custom_call.1} parent=1 // pred_region
      %67 = dma.done [#allocation6], 1024
    $region29: #{tpu_custom_call.1} parent=1 // pred_fallthru
      _
    // Predicated region
    $region30: #{tpu_custom_call.1} parent=1 // pred_check
      _
    $region31: #{tpu_custom_call.1} parent=1 // pred_check_branch
      %69 = sbr.rel (0) target = $region33
    $region32: #{tpu_custom_call.1} parent=1 // pred_region
      %70 = dma.done [#allocation9], 256
    $region33: #{tpu_custom_call.1} parent=1 // pred_fallthru
      _
    %v72 = vld [vmem:[#allocation2] sm:$0xff]
    %v73 = vld [vmem:[#allocation2 + $0x8] sm:$0xff]
    %v74 = vpack.c.bf16 %v73, %v72
    %v75 = vld [vmem:[#allocation8] ss:$8 sm:$0x3]
    %v76 = vld [vmem:[#allocation8 + $0x1] ss:$0 sm:$0xff]
    %v77 = vld [vmem:[#allocation8 + $0x2] ss:$0 sm:$0xff]
    %v78 = vld [vmem:[#allocation8 + $0x9] ss:$0 sm:$0xff]
    %v79 = vld [vmem:[#allocation8 + $0xa] ss:$0 sm:$0xff]
    %v80 = vld [vmem:[#allocation8 + $0xb] ss:$0 sm:$0xff]
    %v81 = vld [vmem:[#allocation5] sm:$0xff]
    %v82 = vld [vmem:[#allocation5 + $0x8] sm:$0xff]
    %v84 = vlaneseq
    %v85 = vshrl.u32 %v84, 7
    %v86 = vsub.s32 0, %v85
    %v87 = vrot.slane %v75, %v86
    %v88 = vlaneseq
    %v89 = vshrl.u32 %v88, 7
    %v90 = vsub.s32 1, %v89
    %v91 = vrot.slane %v75, %v90
    %v96 = vunpack.c.l.b16 %v81
    %v97 = vunpack.c.h.b16 %v81
    %v98 = vunpack.c.l.b16 %v82
    %v99 = vunpack.c.h.b16 %v82
    %v100 = vpack.c.b16 %v98, %v96
    %v101 = vpack.c.b16 %v99, %v97
    %vm104 = vcmask 130048
    %v106 = vsel %vm104, %v74, 0
    %108 = vmatprep.subr.bf16.mxu0 %v101
    %109 = vmatpush1.bf16.msra.mxu0 %v100
    %110 = vmatprep.subr.bf16.mxu0 0
    %111 = vmatpush1.bf16.msra.mxu0 0
    %112 = vmatprep.subr.bf16.mxu0 0
    %113 = vmatpush1.bf16.msra.mxu0 0
    %114 = vmatprep.subr.bf16.mxu0 0
    %115 = vmatpush1.bf16.msra.mxu0 0
    %116 = vmatprep.subr.bf16.mxu0 0
    %117 = vmatpush1.bf16.msra.mxu0 0
    %118 = vmatprep.subr.bf16.mxu0 0
    %119 = vmatpush1.bf16.msra.mxu0 0
    %120 = vmatprep.subr.bf16.mxu0 0
    %121 = vmatpush1.bf16.msra.mxu0 0
    %122 = vmatprep.subr.bf16.mxu0 0
    %123 = vmatpush1.bf16.msra.mxu0 0
    %124 = vmatprep.subr.bf16.mxu0 0
    %125 = vmatpush1.bf16.msra.mxu0 0
    %126 = vmatprep.subr.bf16.mxu0 0
    %127 = vmatpush1.bf16.msra.mxu0 0
    %128 = vmatprep.subr.bf16.mxu0 0
    %129 = vmatpush1.bf16.msra.mxu0 0
    %130 = vmatprep.subr.bf16.mxu0 0
    %131 = vmatpush1.bf16.msra.mxu0 0
    %132 = vmatprep.subr.bf16.mxu0 0
    %133 = vmatpush1.bf16.msra.mxu0 0
    %134 = vmatprep.subr.bf16.mxu0 0
    %135 = vmatpush1.bf16.msra.mxu0 0
    %136 = vmatprep.subr.bf16.mxu0 0
    %137 = vmatpush1.bf16.msra.mxu0 0
    %138 = vmatprep.subr.bf16.mxu0 0
    %139 = vmatpush1.bf16.msra.mxu0 0
    %140 = vmatprep.mubr.bf16.mxu0 0
    %141 = vmatmul.mubr.bf16.gmra.mrb[0].mxu0 %v106
    %v142 = vpop.f32.mrb[0].mxu0
    %v143 = vadd.f32 %v87, %v142
    %v144 = vpop.f32.mrb[0].mxu0
    %v145 = vadd.f32 %v91, %v144
    %v146 = vpop.f32.mrb[0].mxu0
    %v147 = vadd.f32 %v87, %v146
    %v148 = vpop.f32.mrb[0].mxu0
    %v149 = vadd.f32 %v91, %v148
    %150 = vdwg.mxu0
    %vm151 = vcmp.ge.f32.partialorder %v145, 0.0
    %vm152 = vcmp.ge.f32.partialorder %v149, 0.0
    %v153 = vmul.f32 %v145, 0.2
    %v154 = vmul.f32 %v149, 0.2
    %v155 = vsel %vm151, %v145, %v153
    %v156 = vsel %vm152, %v149, %v154
    %157 = vadd.xlane.f32.xlu0 %v143
    %v158 = vpop.xlane.xlu0 %157
    %159 = vadd.xlane.f32.xlu0 %v147
    %v160 = vpop.xlane.xlu0 %159
    %v161 = vmul.f32 %v158, 0.015625
    %v162 = vmul.f32 %v160, 0.015625
    %v163 = vmul.f32 %v143, %v143
    %v164 = vmul.f32 %v147, %v147
    %165 = vadd.xlane.f32.xlu0 %v163
    %v166 = vpop.xlane.xlu0 %165
    %167 = vadd.xlane.f32.xlu0 %v164
    %v168 = vpop.xlane.xlu0 %167
    %v169 = vmul.f32 %v166, 0.015625
    %v170 = vmul.f32 %v168, 0.015625
    %v171 = vmul.f32 %v161, %v161
    %v172 = vmul.f32 %v162, %v162
    %v173 = vsub.f32 %v169, %v171
    %v174 = vsub.f32 %v170, %v172
    %v175 = vmax.f32 %v173, 0.0
    %v176 = vmax.f32 %v174, 0.0
    %v177 = vsub.f32 %v143, %v161
    %v178 = vsub.f32 %v147, %v162
    %v179 = vadd.f32 %v175, 1e-05
    %v180 = vadd.f32 %v176, 1e-05
    %v181 = vrsqrt.pop %v179
    %v182 = vrsqrt.pop %v180
    %v183 = vmul.f32 %v177, %v181
    %v184 = vmul.f32 %v178, %v182
    %v185 = vmul.f32 %v183, %v76
    %v186 = vmul.f32 %v184, %v76
    %v187 = vadd.f32 %v185, %v77
    %v188 = vadd.f32 %v186, %v77
    %vm189 = vcmp.ge.f32.partialorder %v187, 0.0
    %vm190 = vcmp.ge.f32.partialorder %v188, 0.0
    %v191 = vmul.f32 %v187, 0.2
    %v192 = vmul.f32 %v188, 0.2
    %v193 = vsel %vm189, %v187, %v191
    %v194 = vsel %vm190, %v188, %v192
    %v195 = vpack.c.bf16 %v194, %v193
    %v196 = vld [vmem:[#allocation7] sm:$0xf]
    %v197 = vld [vmem:[#allocation7 + $0x4] sm:$0xf]
    %v198 = vld [vmem:[#allocation7 + $0x8] sm:$0xf]
    %v199 = vld [vmem:[#allocation7 + $0xc] sm:$0xf]
    %v200 = vld [vmem:[#allocation7 + $0x10] sm:$0xf]
    %v201 = vld [vmem:[#allocation7 + $0x14] sm:$0xf]
    %v202 = vld [vmem:[#allocation7 + $0x18] sm:$0xf]
    %v203 = vld [vmem:[#allocation7 + $0x1c] sm:$0xf]
    %v204 = vld [vmem:[#allocation7 + $0x20] sm:$0xf]
    %v205 = vld [vmem:[#allocation7 + $0x24] sm:$0xf]
    %v206 = vld [vmem:[#allocation7 + $0x28] sm:$0xf]
    %v207 = vld [vmem:[#allocation7 + $0x2c] sm:$0xf]
    %v208 = vld [vmem:[#allocation7 + $0x30] sm:$0xf]
    %v209 = vld [vmem:[#allocation7 + $0x34] sm:$0xf]
    %v210 = vld [vmem:[#allocation7 + $0x38] sm:$0xf]
    %v211 = vld [vmem:[#allocation7 + $0x3c] sm:$0xf]
    %v228 = vunpack.c.l.b16 %v196
    %v229 = vunpack.c.l.b16 %v197
    %v230 = vunpack.c.l.b16 %v198
    %v231 = vunpack.c.l.b16 %v199
    %v232 = vunpack.c.l.b16 %v200
    %v233 = vunpack.c.l.b16 %v201
    %v234 = vunpack.c.l.b16 %v202
    %v235 = vunpack.c.l.b16 %v203
    %v236 = vunpack.c.l.b16 %v204
    %v237 = vunpack.c.l.b16 %v205
    %v238 = vunpack.c.l.b16 %v206
    %v239 = vunpack.c.l.b16 %v207
    %v240 = vunpack.c.l.b16 %v208
    %v241 = vunpack.c.l.b16 %v209
    %v242 = vunpack.c.l.b16 %v210
    %v243 = vunpack.c.l.b16 %v211
    %v244 = vpack.c.b16 %v229, %v228
    %v245 = vpack.c.b16 %v231, %v230
    %v246 = vpack.c.b16 %v233, %v232
    %v247 = vpack.c.b16 %v235, %v234
    %v248 = vpack.c.b16 %v237, %v236
    %v249 = vpack.c.b16 %v239, %v238
    %v250 = vpack.c.b16 %v241, %v240
    %v251 = vpack.c.b16 %v243, %v242
    %260 = vmatprep.subr.bf16.mxu0 0
    %261 = vmatpush1.bf16.msra.mxu0 %v244
    %262 = vmatprep.subr.bf16.mxu0 0
    %263 = vmatpush1.bf16.msra.mxu0 %v245
    %264 = vmatprep.subr.bf16.mxu0 0
    %265 = vmatpush1.bf16.msra.mxu0 %v246
    %266 = vmatprep.subr.bf16.mxu0 0
    %267 = vmatpush1.bf16.msra.mxu0 %v247
    %268 = vmatprep.subr.bf16.mxu0 0
    %269 = vmatpush1.bf16.msra.mxu0 %v248
    %270 = vmatprep.subr.bf16.mxu0 0
    %271 = vmatpush1.bf16.msra.mxu0 %v249
    %272 = vmatprep.subr.bf16.mxu0 0
    %273 = vmatpush1.bf16.msra.mxu0 %v250
    %274 = vmatprep.subr.bf16.mxu0 0
    %275 = vmatpush1.bf16.msra.mxu0 %v251
    %276 = vmatprep.subr.bf16.mxu0 0
    %277 = vmatpush1.bf16.msra.mxu0 0
    %278 = vmatprep.subr.bf16.mxu0 0
    %279 = vmatpush1.bf16.msra.mxu0 0
    %280 = vmatprep.subr.bf16.mxu0 0
    %281 = vmatpush1.bf16.msra.mxu0 0
    %282 = vmatprep.subr.bf16.mxu0 0
    %283 = vmatpush1.bf16.msra.mxu0 0
    %284 = vmatprep.subr.bf16.mxu0 0
    %285 = vmatpush1.bf16.msra.mxu0 0
    %286 = vmatprep.subr.bf16.mxu0 0
    %287 = vmatpush1.bf16.msra.mxu0 0
    %288 = vmatprep.subr.bf16.mxu0 0
    %289 = vmatpush1.bf16.msra.mxu0 0
    %290 = vmatprep.subr.bf16.mxu0 0
    %291 = vmatpush1.bf16.msra.mxu0 0
    %292 = vmatprep.mubr.bf16.mxu0 0
    %293 = vmatmul.mubr.bf16.gmra.mrb[0].mxu0 %v195
    %v294 = vpop.f32.mrb[0].mxu0
    %v295 = vadd.f32 %v78, %v294
    %v296 = vpop.f32.mrb[0].mxu0
    %v297 = vpop.f32.mrb[0].mxu0
    %v298 = vadd.f32 %v78, %v297
    %v299 = vpop.f32.mrb[0].mxu0
    %300 = vdwg.mxu0
    %301 = vadd.xlane.f32.xlu0 %v295
    %v302 = vpop.xlane.xlu0 %301
    %303 = vadd.xlane.f32.xlu0 %v298
    %v304 = vpop.xlane.xlu0 %303
    %v305 = vmul.f32 %v302, 0.03125
    %v306 = vmul.f32 %v304, 0.03125
    %v307 = vmul.f32 %v295, %v295
    %v308 = vmul.f32 %v298, %v298
    %309 = vadd.xlane.f32.xlu0 %v307
    %v310 = vpop.xlane.xlu0 %309
    %311 = vadd.xlane.f32.xlu0 %v308
    %v312 = vpop.xlane.xlu0 %311
    %v313 = vmul.f32 %v310, 0.03125
    %v314 = vmul.f32 %v312, 0.03125
    %v315 = vmul.f32 %v305, %v305
    %v316 = vmul.f32 %v306, %v306
    %v317 = vsub.f32 %v313, %v315
    %v318 = vsub.f32 %v314, %v316
    %v319 = vmax.f32 %v317, 0.0
    %v320 = vmax.f32 %v318, 0.0
    %v321 = vsub.f32 %v295, %v305
    %v322 = vsub.f32 %v298, %v306
    %v323 = vadd.f32 %v319, 1e-05
    %v324 = vadd.f32 %v320, 1e-05
    %v325 = vrsqrt.pop %v323
    %v326 = vrsqrt.pop %v324
    %v327 = vmul.f32 %v321, %v325
    %v328 = vmul.f32 %v322, %v326
    %v329 = vmul.f32 %v327, %v79
    %v330 = vmul.f32 %v328, %v79
    %v331 = vadd.f32 %v329, %v80
    %v332 = vadd.f32 %v330, %v80
    %v333 = vadd.f32 %v155, %v331
    %v334 = vadd.f32 %v156, %v332
    %vm335 = vcmp.ge.f32.partialorder %v333, 0.0
    %vm336 = vcmp.ge.f32.partialorder %v334, 0.0
    %v337 = vmul.f32 %v333, 0.2
    %v338 = vmul.f32 %v334, 0.2
    %v339 = vsel %vm335, %v333, %v337
    %v340 = vsel %vm336, %v334, %v338
    %341 = vst [vmem:[#allocation10] sm:$0xff] %v339
    %342 = vst [vmem:[#allocation10 + $0x8] sm:$0xff] %v340
    // Predicated region
    $region34: #{tpu_custom_call.1} parent=1 // pred_check
      _
    $region35: #{tpu_custom_call.1} parent=1 // pred_check_branch
      %344 = sbr.rel (0) target = $region37
    $region36: #{tpu_custom_call.1} parent=1 // pred_region
      %s346 = ssub.s32 256, 256
      %347 = vsyncadd [#allocation4], %s346
      %s348 = sshll.u32 [#allocation10], 4
      %s349 = int_to_ptr.vmem [resolvable:$true] %s348
      %354 = dma.vmem_to_hbm [thread:$0]  %s349, 256, %s4, [#allocation4], 128, 128, 8
    $region37: #{tpu_custom_call.1} parent=1 // pred_fallthru
      _
    // Predicated region
    $region38: #{tpu_custom_call.1} parent=1 // pred_check
      _
    $region39: #{tpu_custom_call.1} parent=1 // pred_check_branch
      %356 = sbr.rel (0) target = $region41
    $region40: #{tpu_custom_call.1} parent=1 // pred_region
      %357 = dma.done [#allocation4], 256
    $region41: #{tpu_custom_call.1} parent=1 // pred_fallthru
      _
    %358 = vsyncpa [#allocation3], 1
    %359 = vsyncpa [#allocation6], 1
    %360 = vsyncpa [#allocation9], 1
    %361 = vsyncpa [#allocation4], 1

// kernel: tpu_custom_call.1
$region0: #{tpu_custom_call.1}
  #allocation0 [shape = 'u32[]', space=smem, size = 0x4, offset = 0x4, fixed_abs, tag = 'smem constant byte address 0x4 - core index']
  #allocation1 [shape = 'u32[144,128]{1,0:T(1,128)}', space=vmem, size = 0x12000, scoped, tag = 'internal scratch']
  %s0 = inlined_call_operand.hbm [shape: f32[16,16], index: 0, kind: input, shape index: {}]
  %s1 = inlined_call_operand.hbm [shape: bf16[16,256], index: 1, kind: input, shape index: {}]
  %s2 = inlined_call_operand.hbm [shape: bf16[128,128], index: 2, kind: input, shape index: {}]
  %s3 = inlined_call_operand.hbm [shape: f32[8,256], index: 3, kind: input, shape index: {}]
  %s4 = inlined_call_operand.hbm [shape: f32[16,128], index: 4, kind: output, shape index: {}]
  %s5 = sld [smem:[#allocation0]]
  $region42: #{tpu_custom_call.1} parent=0
    _
  %s7 = ssub.s32 1, %s5
  %s8 = scalar_select 0, %s7, %s5
  $region1: #{tpu_custom_call.1} parent=0
    #allocation2 [shape = 'u8[8192]{0}', space=vmem, size = 0x2000, scoped, tag = 'input window, operand 0, single buffered']
    #allocation3 [shape = 's32[1]{0}', space=sflag, size = 0x4, scoped, tag = 'scoped memory for tpu_custom_call.1']
    #allocation4 [shape = 's32[1]{0}', space=sflag, size = 0x4, scoped, tag = 'scoped memory for tpu_custom_call.1']
    #allocation5 [shape = 'u8[8192]{0}', space=vmem, size = 0x2000, scoped, tag = 'input window, operand 1, single buffered']
    #allocation6 [shape = 's32[1]{0}', space=sflag, size = 0x4, scoped, tag = 'scoped memory for tpu_custom_call.1']
    #allocation7 [shape = 'u8[32768]{0}', space=vmem, size = 0x8000, scoped, tag = 'input window, operand 2, single buffered']
    #allocation8 [shape = 'u8[8192]{0}', space=vmem, size = 0x2000, scoped, tag = 'input window, operand 3, single buffered']
    #allocation9 [shape = 's32[1]{0}', space=sflag, size = 0x4, scoped, tag = 'scoped memory for tpu_custom_call.1']
    #allocation10 [shape = 'u8[8192]{0}', space=vmem, size = 0x2000, scoped, tag = 'output window, operand 0, single buffered']
    %9 = vsyncpa [#allocation3], 0
    %10 = vsyncpa [#allocation6], 0
    %11 = vsyncpa [#allocation9], 0
    %12 = vsyncpa [#allocation4], 0
    // Predicated region
    $region2: #{tpu_custom_call.1} parent=1 // pred_check
      _
    $region3: #{tpu_custom_call.1} parent=1 // pred_check_branch
      %14 = sbr.rel (0) target = $region5
    $region4: #{tpu_custom_call.1} parent=1 // pred_region
      %s16 = ssub.s32 256, 256
      %17 = vsyncadd [#allocation3], %s16
      %s18 = sshll.u32 [#allocation2], 4
      %s19 = int_to_ptr.vmem [resolvable:$true] %s18
      %24 = dma.hbm_to_vmem [thread:$0]  %s0, 256, %s19, [#allocation3], 128, 128, 8
    $region5: #{tpu_custom_call.1} parent=1 // pred_fallthru
      _
    // Predicated region
    $region6: #{tpu_custom_call.1} parent=1 // pred_check
      _
    $region7: #{tpu_custom_call.1} parent=1 // pred_check_branch
      %26 = sbr.rel (0) target = $region9
    $region8: #{tpu_custom_call.1} parent=1 // pred_region
      %s28 = ssub.s32 256, 256
      %29 = vsyncadd [#allocation6], %s28
      %s30 = sshll.u32 [#allocation5], 4
      %s31 = int_to_ptr.vmem [resolvable:$true] %s30
      %36 = dma.hbm_to_vmem [thread:$0]  %s1, 256, %s31, [#allocation6], 128, 128, 8
    $region9: #{tpu_custom_call.1} parent=1 // pred_fallthru
      _
    // Predicated region
    $region10: #{tpu_custom_call.1} parent=1 // pred_check
      _
    $region11: #{tpu_custom_call.1} parent=1 // pred_check_branch
      %38 = sbr.rel (0) target = $region13
    $region12: #{tpu_custom_call.1} parent=1 // pred_region
      %s40 = ssub.s32 1024, 1024
      %41 = vsyncadd [#allocation6], %s40
      %s42 = sshll.u32 [#allocation7], 4
      %s43 = int_to_ptr.vmem [resolvable:$true] %s42
      %48 = dma.hbm_to_vmem [thread:$0]  %s2, 1024, %s43, [#allocation6], 64, 64, 4
    $region13: #{tpu_custom_call.1} parent=1 // pred_fallthru
      _
    // Predicated region
    $region14: #{tpu_custom_call.1} parent=1 // pred_check
      _
    $region15: #{tpu_custom_call.1} parent=1 // pred_check_branch
      %50 = sbr.rel (0) target = $region17
    $region16: #{tpu_custom_call.1} parent=1 // pred_region
      %s52 = ssub.s32 256, 256
      %53 = vsyncadd [#allocation9], %s52
      %s55 = sshll.u32 [#allocation8], 4
      %s56 = int_to_ptr.vmem [resolvable:$true] %s55
      %58 = dma.hbm_to_vmem [thread:$0]  %s3, 256, %s56, [#allocation9]
    $region17: #{tpu_custom_call.1} parent=1 // pred_fallthru
      _
    // Predicated region
    $region18: #{tpu_custom_call.1} parent=1 // pred_check
      _
    $region19: #{tpu_custom_call.1} parent=1 // pred_check_branch
      %60 = sbr.rel (0) target = $region21
    $region20: #{tpu_custom_call.1} parent=1 // pred_region
      %61 = dma.done [#allocation3], 256
    $region21: #{tpu_custom_call.1} parent=1 // pred_fallthru
      _
    // Predicated region
    $region22: #{tpu_custom_call.1} parent=1 // pred_check
      _
    $region23: #{tpu_custom_call.1} parent=1 // pred_check_branch
      %63 = sbr.rel (0) target = $region25
    $region24: #{tpu_custom_call.1} parent=1 // pred_region
      %64 = dma.done [#allocation6], 256
    $region25: #{tpu_custom_call.1} parent=1 // pred_fallthru
      _
    // Predicated region
    $region26: #{tpu_custom_call.1} parent=1 // pred_check
      _
    $region27: #{tpu_custom_call.1} parent=1 // pred_check_branch
      %66 = sbr.rel (0) target = $region29
    $region28: #{tpu_custom_call.1} parent=1 // pred_region
      %67 = dma.done [#allocation6], 1024
    $region29: #{tpu_custom_call.1} parent=1 // pred_fallthru
      _
    // Predicated region
    $region30: #{tpu_custom_call.1} parent=1 // pred_check
      _
    $region31: #{tpu_custom_call.1} parent=1 // pred_check_branch
      %69 = sbr.rel (0) target = $region33
    $region32: #{tpu_custom_call.1} parent=1 // pred_region
      %70 = dma.done [#allocation9], 256
    $region33: #{tpu_custom_call.1} parent=1 // pred_fallthru
      _
    %v72 = vld [vmem:[#allocation2] sm:$0xff]
    %v73 = vld [vmem:[#allocation2 + $0x8] sm:$0xff]
    %v74 = vpack.c.bf16 %v73, %v72
    %v75 = vld [vmem:[#allocation8] ss:$8 sm:$0x3]
    %v76 = vld [vmem:[#allocation8 + $0x1] ss:$0 sm:$0xff]
    %v77 = vld [vmem:[#allocation8 + $0x2] ss:$0 sm:$0xff]
    %v78 = vld [vmem:[#allocation8 + $0x9] ss:$0 sm:$0xff]
    %v79 = vld [vmem:[#allocation8 + $0xa] ss:$0 sm:$0xff]
    %v80 = vld [vmem:[#allocation8 + $0xb] ss:$0 sm:$0xff]
    %v81 = vld [vmem:[#allocation5] sm:$0xff]
    %v82 = vld [vmem:[#allocation5 + $0x8] sm:$0xff]
    %v84 = vlaneseq
    %v85 = vshrl.u32 %v84, 7
    %v86 = vsub.s32 0, %v85
    %v87 = vrot.slane %v75, %v86
    %v88 = vlaneseq
    %v89 = vshrl.u32 %v88, 7
    %v90 = vsub.s32 1, %v89
    %v91 = vrot.slane %v75, %v90
    %v96 = vunpack.c.l.b16 %v81
    %v97 = vunpack.c.h.b16 %v81
    %v98 = vunpack.c.l.b16 %v82
    %v99 = vunpack.c.h.b16 %v82
    %v100 = vpack.c.b16 %v98, %v96
    %v101 = vpack.c.b16 %v99, %v97
    %vm104 = vcmask 130048
    %v106 = vsel %vm104, %v74, 0
    %108 = vmatprep.subr.bf16.mxu0 %v101
    %109 = vmatpush1.bf16.msra.mxu0 %v100
    %110 = vmatprep.subr.bf16.mxu0 0
    %111 = vmatpush1.bf16.msra.mxu0 0
    %112 = vmatprep.subr.bf16.mxu0 0
    %113 = vmatpush1.bf16.msra.mxu0 0
    %114 = vmatprep.subr.bf16.mxu0 0
    %115 = vmatpush1.bf16.msra.mxu0 0
    %116 = vmatprep.subr.bf16.mxu0 0
    %117 = vmatpush1.bf16.msra.mxu0 0
    %118 = vmatprep.subr.bf16.mxu0 0
    %119 = vmatpush1.bf16.msra.mxu0 0
    %120 = vmatprep.subr.bf16.mxu0 0
    %121 = vmatpush1.bf16.msra.mxu0 0
    %122 = vmatprep.subr.bf16.mxu0 0
    %123 = vmatpush1.bf16.msra.mxu0 0
    %124 = vmatprep.subr.bf16.mxu0 0
    %125 = vmatpush1.bf16.msra.mxu0 0
    %126 = vmatprep.subr.bf16.mxu0 0
    %127 = vmatpush1.bf16.msra.mxu0 0
    %128 = vmatprep.subr.bf16.mxu0 0
    %129 = vmatpush1.bf16.msra.mxu0 0
    %130 = vmatprep.subr.bf16.mxu0 0
    %131 = vmatpush1.bf16.msra.mxu0 0
    %132 = vmatprep.subr.bf16.mxu0 0
    %133 = vmatpush1.bf16.msra.mxu0 0
    %134 = vmatprep.subr.bf16.mxu0 0
    %135 = vmatpush1.bf16.msra.mxu0 0
    %136 = vmatprep.subr.bf16.mxu0 0
    %137 = vmatpush1.bf16.msra.mxu0 0
    %138 = vmatprep.subr.bf16.mxu0 0
    %139 = vmatpush1.bf16.msra.mxu0 0
    %140 = vmatprep.mubr.bf16.mxu0 0
    %141 = vmatmul.mubr.bf16.gmra.mrb[0].mxu0 %v106
    %v142 = vpop.f32.mrb[0].mxu0
    %v143 = vadd.f32 %v87, %v142
    %v144 = vpop.f32.mrb[0].mxu0
    %v145 = vadd.f32 %v91, %v144
    %v146 = vpop.f32.mrb[0].mxu0
    %v147 = vadd.f32 %v87, %v146
    %v148 = vpop.f32.mrb[0].mxu0
    %v149 = vadd.f32 %v91, %v148
    %150 = vdwg.mxu0
    %vm151 = vcmp.ge.f32.partialorder %v145, 0.0
    %vm152 = vcmp.ge.f32.partialorder %v149, 0.0
    %v153 = vmul.f32 %v145, 0.2
    %v154 = vmul.f32 %v149, 0.2
    %v155 = vsel %vm151, %v145, %v153
    %v156 = vsel %vm152, %v149, %v154
    %157 = vadd.xlane.f32.xlu0 %v143
    %v158 = vpop.xlane.xlu0 %157
    %159 = vadd.xlane.f32.xlu0 %v147
    %v160 = vpop.xlane.xlu0 %159
    %v161 = vmul.f32 %v158, 0.015625
    %v162 = vmul.f32 %v160, 0.015625
    %v163 = vmul.f32 %v143, %v143
    %v164 = vmul.f32 %v147, %v147
    %165 = vadd.xlane.f32.xlu0 %v163
    %v166 = vpop.xlane.xlu0 %165
    %167 = vadd.xlane.f32.xlu0 %v164
    %v168 = vpop.xlane.xlu0 %167
    %v169 = vmul.f32 %v166, 0.015625
    %v170 = vmul.f32 %v168, 0.015625
    %v171 = vmul.f32 %v161, %v161
    %v172 = vmul.f32 %v162, %v162
    %v173 = vsub.f32 %v169, %v171
    %v174 = vsub.f32 %v170, %v172
    %v175 = vmax.f32 %v173, 0.0
    %v176 = vmax.f32 %v174, 0.0
    %v177 = vsub.f32 %v143, %v161
    %v178 = vsub.f32 %v147, %v162
    %v179 = vadd.f32 %v175, 1e-05
    %v180 = vadd.f32 %v176, 1e-05
    %v181 = vrsqrt.pop %v179
    %v182 = vrsqrt.pop %v180
    %v183 = vmul.f32 %v177, %v181
    %v184 = vmul.f32 %v178, %v182
    %v185 = vmul.f32 %v183, %v76
    %v186 = vmul.f32 %v184, %v76
    %v187 = vadd.f32 %v185, %v77
    %v188 = vadd.f32 %v186, %v77
    %vm189 = vcmp.ge.f32.partialorder %v187, 0.0
    %vm190 = vcmp.ge.f32.partialorder %v188, 0.0
    %v191 = vmul.f32 %v187, 0.2
    %v192 = vmul.f32 %v188, 0.2
    %v193 = vsel %vm189, %v187, %v191
    %v194 = vsel %vm190, %v188, %v192
    %v195 = vpack.c.bf16 %v194, %v193
    %v196 = vld [vmem:[#allocation7] sm:$0xf]
    %v197 = vld [vmem:[#allocation7 + $0x4] sm:$0xf]
    %v198 = vld [vmem:[#allocation7 + $0x8] sm:$0xf]
    %v199 = vld [vmem:[#allocation7 + $0xc] sm:$0xf]
    %v200 = vld [vmem:[#allocation7 + $0x10] sm:$0xf]
    %v201 = vld [vmem:[#allocation7 + $0x14] sm:$0xf]
    %v202 = vld [vmem:[#allocation7 + $0x18] sm:$0xf]
    %v203 = vld [vmem:[#allocation7 + $0x1c] sm:$0xf]
    %v204 = vld [vmem:[#allocation7 + $0x20] sm:$0xf]
    %v205 = vld [vmem:[#allocation7 + $0x24] sm:$0xf]
    %v206 = vld [vmem:[#allocation7 + $0x28] sm:$0xf]
    %v207 = vld [vmem:[#allocation7 + $0x2c] sm:$0xf]
    %v208 = vld [vmem:[#allocation7 + $0x30] sm:$0xf]
    %v209 = vld [vmem:[#allocation7 + $0x34] sm:$0xf]
    %v210 = vld [vmem:[#allocation7 + $0x38] sm:$0xf]
    %v211 = vld [vmem:[#allocation7 + $0x3c] sm:$0xf]
    %v228 = vunpack.c.l.b16 %v196
    %v229 = vunpack.c.l.b16 %v197
    %v230 = vunpack.c.l.b16 %v198
    %v231 = vunpack.c.l.b16 %v199
    %v232 = vunpack.c.l.b16 %v200
    %v233 = vunpack.c.l.b16 %v201
    %v234 = vunpack.c.l.b16 %v202
    %v235 = vunpack.c.l.b16 %v203
    %v236 = vunpack.c.l.b16 %v204
    %v237 = vunpack.c.l.b16 %v205
    %v238 = vunpack.c.l.b16 %v206
    %v239 = vunpack.c.l.b16 %v207
    %v240 = vunpack.c.l.b16 %v208
    %v241 = vunpack.c.l.b16 %v209
    %v242 = vunpack.c.l.b16 %v210
    %v243 = vunpack.c.l.b16 %v211
    %v244 = vpack.c.b16 %v229, %v228
    %v245 = vpack.c.b16 %v231, %v230
    %v246 = vpack.c.b16 %v233, %v232
    %v247 = vpack.c.b16 %v235, %v234
    %v248 = vpack.c.b16 %v237, %v236
    %v249 = vpack.c.b16 %v239, %v238
    %v250 = vpack.c.b16 %v241, %v240
    %v251 = vpack.c.b16 %v243, %v242
    %260 = vmatprep.subr.bf16.mxu0 0
    %261 = vmatpush1.bf16.msra.mxu0 %v244
    %262 = vmatprep.subr.bf16.mxu0 0
    %263 = vmatpush1.bf16.msra.mxu0 %v245
    %264 = vmatprep.subr.bf16.mxu0 0
    %265 = vmatpush1.bf16.msra.mxu0 %v246
    %266 = vmatprep.subr.bf16.mxu0 0
    %267 = vmatpush1.bf16.msra.mxu0 %v247
    %268 = vmatprep.subr.bf16.mxu0 0
    %269 = vmatpush1.bf16.msra.mxu0 %v248
    %270 = vmatprep.subr.bf16.mxu0 0
    %271 = vmatpush1.bf16.msra.mxu0 %v249
    %272 = vmatprep.subr.bf16.mxu0 0
    %273 = vmatpush1.bf16.msra.mxu0 %v250
    %274 = vmatprep.subr.bf16.mxu0 0
    %275 = vmatpush1.bf16.msra.mxu0 %v251
    %276 = vmatprep.subr.bf16.mxu0 0
    %277 = vmatpush1.bf16.msra.mxu0 0
    %278 = vmatprep.subr.bf16.mxu0 0
    %279 = vmatpush1.bf16.msra.mxu0 0
    %280 = vmatprep.subr.bf16.mxu0 0
    %281 = vmatpush1.bf16.msra.mxu0 0
    %282 = vmatprep.subr.bf16.mxu0 0
    %283 = vmatpush1.bf16.msra.mxu0 0
    %284 = vmatprep.subr.bf16.mxu0 0
    %285 = vmatpush1.bf16.msra.mxu0 0
    %286 = vmatprep.subr.bf16.mxu0 0
    %287 = vmatpush1.bf16.msra.mxu0 0
    %288 = vmatprep.subr.bf16.mxu0 0
    %289 = vmatpush1.bf16.msra.mxu0 0
    %290 = vmatprep.subr.bf16.mxu0 0
    %291 = vmatpush1.bf16.msra.mxu0 0
    %292 = vmatprep.mubr.bf16.mxu0 0
    %293 = vmatmul.mubr.bf16.gmra.mrb[0].mxu0 %v195
    %v294 = vpop.f32.mrb[0].mxu0
    %v295 = vadd.f32 %v78, %v294
    %v296 = vpop.f32.mrb[0].mxu0
    %v297 = vpop.f32.mrb[0].mxu0
    %v298 = vadd.f32 %v78, %v297
    %v299 = vpop.f32.mrb[0].mxu0
    %300 = vdwg.mxu0
    %301 = vadd.xlane.f32.xlu0 %v295
    %v302 = vpop.xlane.xlu0 %301
    %303 = vadd.xlane.f32.xlu0 %v298
    %v304 = vpop.xlane.xlu0 %303
    %v305 = vmul.f32 %v302, 0.03125
    %v306 = vmul.f32 %v304, 0.03125
    %v307 = vmul.f32 %v295, %v295
    %v308 = vmul.f32 %v298, %v298
    %309 = vadd.xlane.f32.xlu0 %v307
    %v310 = vpop.xlane.xlu0 %309
    %311 = vadd.xlane.f32.xlu0 %v308
    %v312 = vpop.xlane.xlu0 %311
    %v313 = vmul.f32 %v310, 0.03125
    %v314 = vmul.f32 %v312, 0.03125
    %v315 = vmul.f32 %v305, %v305
    %v316 = vmul.f32 %v306, %v306
    %v317 = vsub.f32 %v313, %v315
    %v318 = vsub.f32 %v314, %v316
    %v319 = vmax.f32 %v317, 0.0
    %v320 = vmax.f32 %v318, 0.0
    %v321 = vsub.f32 %v295, %v305
    %v322 = vsub.f32 %v298, %v306
    %v323 = vadd.f32 %v319, 1e-05
    %v324 = vadd.f32 %v320, 1e-05
    %v325 = vrsqrt.pop %v323
    %v326 = vrsqrt.pop %v324
    %v327 = vmul.f32 %v321, %v325
    %v328 = vmul.f32 %v322, %v326
    %v329 = vmul.f32 %v327, %v79
    %v330 = vmul.f32 %v328, %v79
    %v331 = vadd.f32 %v329, %v80
    %v332 = vadd.f32 %v330, %v80
    %v333 = vadd.f32 %v155, %v331
    %v334 = vadd.f32 %v156, %v332
    %vm335 = vcmp.ge.f32.partialorder %v333, 0.0
    %vm336 = vcmp.ge.f32.partialorder %v334, 0.0
    %v337 = vmul.f32 %v333, 0.2
    %v338 = vmul.f32 %v334, 0.2
    %v339 = vsel %vm335, %v333, %v337
    %v340 = vsel %vm336, %v334, %v338
    %341 = vst [vmem:[#allocation10] sm:$0xff] %v339
    %342 = vst [vmem:[#allocation10 + $0x8] sm:$0xff] %v340
    // Predicated region
    $region34: #{tpu_custom_call.1} parent=1 // pred_check
      _
    $region35: #{tpu_custom_call.1} parent=1 // pred_check_branch
      %344 = sbr.rel (0) target = $region37
    $region36: #{tpu_custom_call.1} parent=1 // pred_region
      %s346 = ssub.s32 256, 256
      %347 = vsyncadd [#allocation4], %s346
      %s348 = sshll.u32 [#allocation10], 4
      %s349 = int_to_ptr.vmem [resolvable:$true] %s348
      %354 = dma.vmem_to_hbm [thread:$0]  %s349, 256, %s4, [#allocation4], 128, 128, 8
    $region37: #{tpu_custom_call.1} parent=1 // pred_fallthru
      _
    // Predicated region
    $region38: #{tpu_custom_call.1} parent=1 // pred_check
      _
    $region39: #{tpu_custom_call.1} parent=1 // pred_check_branch
      %356 = sbr.rel (0) target = $region41
    $region40: #{tpu_custom_call.1} parent=1 // pred_region
      %357 = dma.done [#allocation4], 256
    $region41: #{tpu_custom_call.1} parent=1 // pred_fallthru
      _
    %358 = vsyncpa [#allocation3], 1
    %359 = vsyncpa [#allocation6], 1
    %360 = vsyncpa [#allocation9], 1
    %361 = vsyncpa [#allocation4], 1

</llo_original>
